<compile_context>
chip_gen: v5e
topology: v5e:2x2
jax: 0.10.0
libtpu: 0.0.40
codegen_flags: <defaults>
</compile_context>

<pallas_src>
import functools

import jax
import jax.numpy as jnp
from jax import lax
from jax.experimental import pallas as pl
from jax.experimental.pallas import tpu as pltpu


# ----------------------------------------------------------------------------
# helpers
# ----------------------------------------------------------------------------
def _round_up(x, m):
    return -(-x // m) * m


_VMEM_LIMIT = None


def _vmem_limit_bytes():
    """~3/4 of physical VMEM, capped at 96 MiB (48 MiB on v7x's 64 MiB parts)."""
    global _VMEM_LIMIT
    if _VMEM_LIMIT is None:
        try:
            cap = int(pltpu.get_tpu_info().vmem_capacity_bytes)
        except Exception:
            cap = 64 * 1024 * 1024
        _VMEM_LIMIT = min(cap * 3 // 4, 96 * 1024 * 1024)
    return _VMEM_LIMIT


def _choose_m_tile(M, target, quantum=16, min_split=256):
    """Pick (tm, Mp) for the row (M) grid axis.

    Prefers no padding (tm == M or tm divides M, bf16 sublane quantum 16);
    when all of M fits one block but M is large, split in two so the
    'parallel' axis shards across both v7x TensorCores.
    """
    if M <= target:
        if M >= min_split and M % (2 * quantum) == 0:
            return M // 2, M            # >=2 blocks -> both TCs busy on v7x
        return M, M                     # single full-extent block, no pad
    t = (target // quantum) * quantum
    while t >= quantum:
        if M % t == 0:
            return t, M                 # exact divisor -> no pad copy
        t -= quantum
    Mp = _round_up(M, quantum)          # rare fallback: minimal (<16 row) pad
    t = (min(target, Mp) // quantum) * quantum
    while Mp % t:
        t -= quantum
    return t, Mp


_SINGLE_BUFFER_WEIGHTS = True           # latched False if pl.Buffered(1) rejected


def _maybe_single_buffered(run):
    """run(single_buffer: bool) -> result.

    Tries to keep constant-index weights single-buffered (pl.Buffered(1),
    saves one VMEM copy); falls back to default double-buffering if this
    JAX/Mosaic version rejects buffer_count=1.
    """
    global _SINGLE_BUFFER_WEIGHTS
    if _SINGLE_BUFFER_WEIGHTS:
        try:
            return run(True)
        except Exception:
            _SINGLE_BUFFER_WEIGHTS = False
    return run(False)


# ----------------------------------------------------------------------------
# Pallas kernels
# ----------------------------------------------------------------------------
def _conv_bn_relu_kernel(x_ref, w_ref, b_ref, o_ref):
    # out = relu(x @ w_scaled + bias)      (BN scale pre-folded into w)
    acc = jnp.dot(x_ref[...], w_ref[...], preferred_element_type=jnp.float32)
    o_ref[...] = jnp.maximum(acc + b_ref[...], 0.0).astype(o_ref.dtype)


def _fused_block_kernel(width, cp, x_ref, w1_ref, b1_ref, w2_ref, b2_ref, o_ref):
    # h   = relu(x @ w1_scaled + b1)                (width-fw conv + BN + ReLU)
    # out = relu(h @ w2_scaled + b2) + residual     (1x1 conv + BN + ReLU + add)
    # residual = the (width//2)-th time step of each window, i.e. a static,
    # 128-aligned column slice of the windowed x tile (no separate HBM stream).
    h = jnp.dot(x_ref[...], w1_ref[...], preferred_element_type=jnp.float32)
    h = jnp.maximum(h + b1_ref[...], 0.0)
    y = jnp.dot(h.astype(w2_ref.dtype), w2_ref[...],
                preferred_element_type=jnp.float32)
    c0 = (width // 2) * cp
    res = x_ref[:, c0:c0 + cp].astype(jnp.float32)
    o_ref[...] = (jnp.maximum(y + b2_ref[...], 0.0) + res).astype(o_ref.dtype)


# ----------------------------------------------------------------------------
# pallas_call wrappers (channels-last activations, channel dims pre-padded)
# ----------------------------------------------------------------------------
def _conv_bn_relu(x_btc, w_kn, bias_1n, width, tm_target=1024):
    """x:(B,T,Cp) bf16, w:(width*Cp, Np) bf16, bias:(1,Np) f32 -> (B,Tout,Np) bf16."""
    B, T, cp_in = x_btc.shape
    K, Np = w_kn.shape
    Tout = (T - width) // width + 1
    M = B * Tout

    # Non-overlapping windows (stride == width) -> pure reshape, no gather.
    xw = x_btc[:, : Tout * width, :].reshape(M, width * cp_in)

    tm, Mp = _choose_m_tile(M, tm_target)
    if Mp != M:
        xw = jnp.pad(xw, ((0, Mp - M), (0, 0)))

    def run(single_buffer):
        wmode = {"pipeline_mode": pl.Buffered(1)} if single_buffer else {}
        return pl.pallas_call(
            _conv_bn_relu_kernel,
            out_shape=jax.ShapeDtypeStruct((Mp, Np), jnp.bfloat16),
            grid=(Mp // tm,),
            in_specs=[
                pl.BlockSpec((tm, K), lambda i: (i, 0)),
                # Full-N resident weight: DMA'd once, never re-streamed per
                # M block (K*Np bf16 is < 1 MiB for the expand conv).
                pl.BlockSpec((K, Np), lambda i: (0, 0), **wmode),
                pl.BlockSpec((1, Np), lambda i: (0, 0), **wmode),
            ],
            out_specs=pl.BlockSpec((tm, Np), lambda i: (i, 0)),
            compiler_params=pltpu.CompilerParams(
                dimension_semantics=("parallel",),
                vmem_limit_bytes=_vmem_limit_bytes()),
        )(xw, w_kn, bias_1n)

    out = _maybe_single_buffered(run)
    if Mp != M:
        out = out[:M]
    return out.reshape(B, Tout, Np)


def _residual_block(x_btc, blk, width, tm_target=512):
    """Fused (width-fw conv + 1x1 conv + residual) block, one pallas_call."""
    B, T, cp = x_btc.shape
    Tout = (T - width) // width + 1
    M = B * Tout
    K1 = width * cp

    xw = x_btc[:, : Tout * width, :].reshape(M, K1)

    tm, Mp = _choose_m_tile(M, tm_target)
    if Mp != M:
        xw = jnp.pad(xw, ((0, Mp - M), (0, 0)))

    kernel = functools.partial(_fused_block_kernel, width, cp)

    def run(single_buffer):
        wmode = {"pipeline_mode": pl.Buffered(1)} if single_buffer else {}
        return pl.pallas_call(
            kernel,
            out_shape=jax.ShapeDtypeStruct((Mp, cp), jnp.bfloat16),
            grid=(Mp // tm,),
            in_specs=[
                pl.BlockSpec((tm, K1), lambda i: (i, 0)),
                pl.BlockSpec((K1, cp), lambda i: (0, 0), **wmode),
                pl.BlockSpec((1, cp), lambda i: (0, 0), **wmode),
                pl.BlockSpec((cp, cp), lambda i: (0, 0), **wmode),
                pl.BlockSpec((1, cp), lambda i: (0, 0), **wmode),
            ],
            out_specs=pl.BlockSpec((tm, cp), lambda i: (i, 0)),
            compiler_params=pltpu.CompilerParams(
                dimension_semantics=("parallel",),
                vmem_limit_bytes=_vmem_limit_bytes()),
        )(xw, blk["w1"], blk["b1"], blk["w2"], blk["b2"])

    out = _maybe_single_buffered(run)
    if Mp != M:
        out = out[:M]
    return out.reshape(B, Tout, cp)


# ----------------------------------------------------------------------------
# Parameter preparation: fold BN running stats + scale into weights, pad
# channel dims to 128 multiples, cast to bf16 -- all done once, outside the
# per-forward path.
# ----------------------------------------------------------------------------
def prepare_kernel_params(params, in_channels, filter_widths, channels):
    cin_p = _round_up(in_channels, 128)
    cp = _round_up(channels, 128)

    def prep_w(w_oiw, cin, cin_pad, cout_pad, scale):
        cout, _, k = w_oiw.shape
        w = w_oiw * scale[:, None, None]                 # fold BN scale
        w = jnp.transpose(w, (2, 1, 0))                  # (k, Cin, Cout)
        w = jnp.pad(w, ((0, 0), (0, cin_pad - cin), (0, cout_pad - cout)))
        return w.reshape(k * cin_pad, cout_pad).astype(jnp.bfloat16)

    def prep_b(bias, cout_pad):
        return jnp.pad(bias, (0, cout_pad - bias.shape[0]))[None, :].astype(jnp.float32)

    s0, b0 = params["expand_bn"]
    kp = {
        "expand_w": prep_w(params["expand_w"], in_channels, cin_p, cp, s0),
        "expand_b": prep_b(b0, cp),
        "blocks": [],
        "cin_p": cin_p,
        "cp": cp,
        "channels": channels,
    }
    for i in range(len(filter_widths) - 1):
        s1, b1 = params["layers_bn"][2 * i]
        s2, b2 = params["layers_bn"][2 * i + 1]
        kp["blocks"].append(dict(
            w1=prep_w(params["layers_w"][2 * i], channels, cp, cp, s1),
            b1=prep_b(b1, cp),
            w2=prep_w(params["layers_w"][2 * i + 1], channels, cp, cp, s2),
            b2=prep_b(b2, cp),
        ))
    return kp


# ----------------------------------------------------------------------------
# Full forward pass (mirrors TemporalModelOptimized1f.forward, eval mode).
# ----------------------------------------------------------------------------
def temporal_model_forward(kparams, pos_3d, pos_2d, bone_angle, filter_widths):
    B, T = pos_2d.shape[:2]
    x = jnp.concatenate(
        [pos_3d.reshape(B, T, -1), pos_2d.reshape(B, T, -1),
         bone_angle.reshape(B, T, -1)], axis=-1)          # (B, T, in_channels)
    cin = x.shape[-1]
    # Pad the channel axis once; padded columns stay exactly zero end to end.
    x = jnp.pad(x, ((0, 0), (0, 0), (0, kparams["cin_p"] - cin)))
    x = x.astype(jnp.bfloat16)

    x = _conv_bn_relu(x, kparams["expand_w"], kparams["expand_b"],
                      filter_widths[0])                   # expand conv (no residual)

    for i in range(1, len(filter_widths)):                # fused residual blocks
        x = _residual_block(x, kparams["blocks"][i - 1], filter_widths[i])

    x = x[..., : kparams["channels"]]                     # drop channel padding
    return jnp.transpose(x, (0, 2, 1)).astype(jnp.float32)  # (B, C, T_out)


# ----------------------------------------------------------------------------
# Deterministic parameter init (BN running stats folded into scale/bias).
# ----------------------------------------------------------------------------
def init_params(key, in_channels, filter_widths, channels):
    eps = 1e-5
    keys = iter(jax.random.split(key, 64))

    def conv_w(k, cout, cin, w):
        return 0.05 * jax.random.normal(k, (cout, cin, w), jnp.float32)

    def bn(k):
        k1, k2, k3, k4 = jax.random.split(k, 4)
        gamma = 1.0 + 0.1 * jax.random.normal(k1, (channels,), jnp.float32)
        beta = 0.1 * jax.random.normal(k2, (channels,), jnp.float32)
        mean = 0.1 * jax.random.normal(k3, (channels,), jnp.float32)
        var = 1.0 + 0.1 * jax.random.uniform(k4, (channels,), jnp.float32)
        scale = gamma / jnp.sqrt(var + eps)
        bias = beta - mean * scale
        return scale, bias

    params = {
        "expand_w": conv_w(next(keys), channels, in_channels, filter_widths[0]),
        "expand_bn": bn(next(keys)),
        "layers_w": [],
        "layers_bn": [],
    }
    for i in range(1, len(filter_widths)):
        params["layers_w"].append(conv_w(next(keys), channels, channels,
                                         filter_widths[i]))
        params["layers_bn"].append(bn(next(keys)))
        params["layers_w"].append(conv_w(next(keys), channels, channels, 1))
        params["layers_bn"].append(bn(next(keys)))
    return params


# ----------------------------------------------------------------------------
# Pure-JAX (lax.conv) reference, mirroring the PyTorch NCT code path, with
# operands quantized to bf16 to match the kernel's MXU precision.
# ----------------------------------------------------------------------------
def reference_forward(params, pos_3d, pos_2d, bone_angle, filter_widths):
    def q(a):
        return a.astype(jnp.bfloat16).astype(jnp.float32)

    B, T = pos_2d.shape[:2]
    x = jnp.concatenate(
        [pos_3d.reshape(B, T, -1), pos_2d.reshape(B, T, -1),
         bone_angle.reshape(B, T, -1)], axis=-1)
    x = jnp.transpose(x, (0, 2, 1))  # (B, C, T)

    def cbr(x, w, sb, stride):
        s, b = sb
        wf = q(w * s[:, None, None])
        y = lax.conv_general_dilated(q(x), wf, (stride,), "VALID",
                                     dimension_numbers=("NCH", "OIH", "NCH"))
        return jnp.maximum(y + b[None, :, None], 0.0)

    x = cbr(x, params["expand_w"], params["expand_bn"], filter_widths[0])
    for i in range(1, len(filter_widths)):
        fw = filter_widths[i]
        res = x[:, :, fw // 2 :: fw]
        x = cbr(x, params["layers_w"][2 * (i - 1)],
                params["layers_bn"][2 * (i - 1)], fw)
        x = res + cbr(x, params["layers_w"][2 * (i - 1) + 1],
                      params["layers_bn"][2 * (i - 1) + 1], 1)
    return x


if __name__ == "__main__":
    key = jax.random.PRNGKey(0)
    B, T = 2, 9
    V3, C3 = 17, 3   # pos_3d
    V1, C1 = 17, 2   # pos_2d
    V2, C2 = 8, 2    # bone_angle
    channels = 128
    filter_widths = [3, 3]
    in_channels = V3 * C3 + V1 * C1 + V2 * C2

    k1, k2, k3, kp = jax.random.split(key, 4)
    pos_3d = jax.random.normal(k1, (B, T, V3, C3), jnp.float32)
    pos_2d = jax.random.normal(k2, (B, T, V1, C1), jnp.float32)
    bone_angle = jax.random.normal(k3, (B, T, V2, C2), jnp.float32)

    params = init_params(kp, in_channels, filter_widths, channels)
    kparams = prepare_kernel_params(params, in_channels, filter_widths, channels)

    out = temporal_model_forward(kparams, pos_3d, pos_2d, bone_angle,
                                 filter_widths)
    out = jax.block_until_ready(out)

    ref = reference_forward(params, pos_3d, pos_2d, bone_angle, filter_widths)
    ref = jax.block_until_ready(ref)

    assert out.shape == ref.shape == (B, channels, 1), (out.shape, ref.shape)
    assert jnp.allclose(out, ref, atol=5e-2, rtol=5e-2), (
        "mismatch vs reference: max abs diff = %f"
        % float(jnp.max(jnp.abs(out - ref))))
    print("KERNEL_OK")
</pallas_src>

<mosaic_0001>
module attributes {stable_mosaic.version = 11 : i64} {
  func.func @_conv_bn_relu_kernel(%arg0: i32, %arg1: memref<6x384xbf16, #tpu.memory_space<vmem>>, %arg2: memref<384x128xbf16, #tpu.memory_space<vmem>>, %arg3: memref<1x128xf32, #tpu.memory_space<vmem>>, %arg4: memref<6x128xbf16, #tpu.memory_space<vmem>>) attributes {dimension_semantics = [#tpu.dimension_semantics<parallel>], iteration_bounds = array<i64: 1>, scalar_prefetch = 0 : i64, scratch_operands = 0 : i64, tpu.core_type = #tpu.core_type<tc>, window_params = [{transform_indices = @transform_0, window_bounds = array<i64: 6, 384>}, {pipeline_mode = #tpu.pipeline_mode<synchronous>, transform_indices = @transform_1, window_bounds = array<i64: 384, 128>}, {pipeline_mode = #tpu.pipeline_mode<synchronous>, transform_indices = @transform_2, window_bounds = array<i64: 1, 128>}, {transform_indices = @transform_3, window_bounds = array<i64: 6, 128>}]} {
    %c0 = arith.constant 0 : index
    %c0_0 = arith.constant 0 : index
    %0 = vector.load %arg1[%c0, %c0_0] : memref<6x384xbf16, #tpu.memory_space<vmem>>, vector<6x384xbf16>
    %c0_1 = arith.constant 0 : index
    %c0_2 = arith.constant 0 : index
    %1 = vector.load %arg2[%c0_1, %c0_2] : memref<384x128xbf16, #tpu.memory_space<vmem>>, vector<384x128xbf16>
    %cst = arith.constant dense<0.000000e+00> : vector<6x128xf32>
    %2 = tpu.matmul %0, %1, %cst {dimension_numbers = #tpu.dot_dimension_numbers<[1], [0], [0], [1], [0, 0, 1, 1], [], []>} : vector<6x384xbf16>, vector<384x128xbf16>, vector<6x128xf32> -> vector<6x128xf32>
    %c0_3 = arith.constant 0 : index
    %c0_4 = arith.constant 0 : index
    %3 = vector.load %arg3[%c0_3, %c0_4] : memref<1x128xf32, #tpu.memory_space<vmem>>, vector<1x128xf32>
    %4 = vector.broadcast %3 : vector<1x128xf32> to vector<6x128xf32>
    %5 = arith.addf %2, %4 : vector<6x128xf32>
    %cst_5 = arith.constant 0.000000e+00 : f32
    %6 = vector.broadcast %cst_5 : f32 to vector<6x128xf32>
    %7 = arith.maximumf %5, %6 : vector<6x128xf32>
    %8 = arith.truncf %7 : vector<6x128xf32> to vector<6x128xbf16>
    %c0_6 = arith.constant 0 : index
    %c0_7 = arith.constant 0 : index
    %9 = vector.load %arg4[%c0_6, %c0_7] : memref<6x128xbf16, #tpu.memory_space<vmem>>, vector<6x128xbf16>
    tpu.vector_store %arg4[%c0_6, %c0_7], %8 {strides = array<i32>} : memref<6x128xbf16, #tpu.memory_space<vmem>>, vector<6x128xbf16>,
    return
  }
  func.func @transform_0(%arg0: i32) -> (i32, i32) {
    %c0_i32 = arith.constant 0 : i32
    %c0_i32_0 = arith.constant 0 : i32
    return %arg0, %c0_i32 : i32, i32
  }
  func.func @transform_1(%arg0: i32) -> (i32, i32) {
    %c0_i32 = arith.constant 0 : i32
    %c0_i32_0 = arith.constant 0 : i32
    %c0_i32_1 = arith.constant 0 : i32
    return %c0_i32, %c0_i32_0 : i32, i32
  }
  func.func @transform_2(%arg0: i32) -> (i32, i32) {
    %c0_i32 = arith.constant 0 : i32
    %c0_i32_0 = arith.constant 0 : i32
    %c0_i32_1 = arith.constant 0 : i32
    return %c0_i32, %c0_i32_0 : i32, i32
  }
  func.func @transform_3(%arg0: i32) -> (i32, i32) {
    %c0_i32 = arith.constant 0 : i32
    %c0_i32_0 = arith.constant 0 : i32
    return %arg0, %c0_i32 : i32, i32
  }
}

module attributes {stable_mosaic.version = 11 : i64} {
  func.func @_conv_bn_relu_kernel(%arg0: i32, %arg1: memref<6x384xbf16, #tpu.memory_space<vmem>>, %arg2: memref<384x128xbf16, #tpu.memory_space<vmem>>, %arg3: memref<1x128xf32, #tpu.memory_space<vmem>>, %arg4: memref<6x128xbf16, #tpu.memory_space<vmem>>) attributes {dimension_semantics = [#tpu.dimension_semantics<parallel>], iteration_bounds = array<i64: 1>, scalar_prefetch = 0 : i64, scratch_operands = 0 : i64, tpu.core_type = #tpu.core_type<tc>, window_params = [{transform_indices = @transform_0, window_bounds = array<i64: 6, 384>}, {pipeline_mode = #tpu.pipeline_mode<synchronous>, transform_indices = @transform_1, window_bounds = array<i64: 384, 128>}, {pipeline_mode = #tpu.pipeline_mode<synchronous>, transform_indices = @transform_2, window_bounds = array<i64: 1, 128>}, {transform_indices = @transform_3, window_bounds = array<i64: 6, 128>}]} {
    %c0 = arith.constant 0 : index
    %c0_0 = arith.constant 0 : index
    %0 = vector.load %arg1[%c0, %c0_0] : memref<6x384xbf16, #tpu.memory_space<vmem>>, vector<6x384xbf16>
    %c0_1 = arith.constant 0 : index
    %c0_2 = arith.constant 0 : index
    %1 = vector.load %arg2[%c0_1, %c0_2] : memref<384x128xbf16, #tpu.memory_space<vmem>>, vector<384x128xbf16>
    %cst = arith.constant dense<0.000000e+00> : vector<6x128xf32>
    %2 = tpu.matmul %0, %1, %cst {dimension_numbers = #tpu.dot_dimension_numbers<[1], [0], [0], [1], [0, 0, 1, 1], [], []>} : vector<6x384xbf16>, vector<384x128xbf16>, vector<6x128xf32> -> vector<6x128xf32>
    %c0_3 = arith.constant 0 : index
    %c0_4 = arith.constant 0 : index
    %3 = vector.load %arg3[%c0_3, %c0_4] : memref<1x128xf32, #tpu.memory_space<vmem>>, vector<1x128xf32>
    %4 = vector.broadcast %3 : vector<1x128xf32> to vector<6x128xf32>
    %5 = arith.addf %2, %4 : vector<6x128xf32>
    %cst_5 = arith.constant 0.000000e+00 : f32
    %6 = vector.broadcast %cst_5 : f32 to vector<6x128xf32>
    %7 = arith.maximumf %5, %6 : vector<6x128xf32>
    %8 = arith.truncf %7 : vector<6x128xf32> to vector<6x128xbf16>
    %c0_6 = arith.constant 0 : index
    %c0_7 = arith.constant 0 : index
    %9 = vector.load %arg4[%c0_6, %c0_7] : memref<6x128xbf16, #tpu.memory_space<vmem>>, vector<6x128xbf16>
    tpu.vector_store %arg4[%c0_6, %c0_7], %8 {strides = array<i32>} : memref<6x128xbf16, #tpu.memory_space<vmem>>, vector<6x128xbf16>,
    return
  }
  func.func @transform_0(%arg0: i32) -> (i32, i32) {
    %c0_i32 = arith.constant 0 : i32
    %c0_i32_0 = arith.constant 0 : i32
    return %arg0, %c0_i32 : i32, i32
  }
  func.func @transform_1(%arg0: i32) -> (i32, i32) {
    %c0_i32 = arith.constant 0 : i32
    %c0_i32_0 = arith.constant 0 : i32
    %c0_i32_1 = arith.constant 0 : i32
    return %c0_i32, %c0_i32_0 : i32, i32
  }
  func.func @transform_2(%arg0: i32) -> (i32, i32) {
    %c0_i32 = arith.constant 0 : i32
    %c0_i32_0 = arith.constant 0 : i32
    %c0_i32_1 = arith.constant 0 : i32
    return %c0_i32, %c0_i32_0 : i32, i32
  }
  func.func @transform_3(%arg0: i32) -> (i32, i32) {
    %c0_i32 = arith.constant 0 : i32
    %c0_i32_0 = arith.constant 0 : i32
    return %arg0, %c0_i32 : i32, i32
  }
}

</mosaic_0001>

<llo_original>
// kernel: tpu_custom_call.1
$region0: #{tpu_custom_call.1}
  #allocation0 [shape = 'u32[]', space=smem, size = 0x4, offset = 0x4, fixed_abs, tag = 'smem constant byte address 0x4 - core index']
  #allocation1 [shape = 'u32[72,128]{1,0:T(1,128)}', space=vmem, size = 0x9000, scoped, tag = 'internal scratch']
  %s0 = inlined_call_operand.hbm [shape: bf16[6,384], index: 0, kind: input, shape index: {}]
  %s1 = inlined_call_operand.hbm [shape: bf16[384,128], index: 1, kind: input, shape index: {}]
  %s2 = inlined_call_operand.vmem [shape: f32[1,128], index: 2, kind: input, shape index: {}]
  %s3 = inlined_call_operand.hbm [shape: bf16[6,128], index: 3, kind: output, shape index: {}]
  %s4 = sld [smem:[#allocation0]]
  $region30: #{tpu_custom_call.1} parent=0
    _
  %s6 = ssub.s32 1, %s4
  %s7 = scalar_select 0, %s6, %s4
  $region1: #{tpu_custom_call.1} parent=0
    #allocation2 [shape = 'u8[6144]{0}', space=vmem, size = 0x1800, scoped, tag = 'input window, operand 0, single buffered']
    #allocation3 [shape = 's32[1]{0}', space=sflag, size = 0x4, scoped, tag = 'scoped memory for tpu_custom_call.1']
    #allocation4 [shape = 's32[1]{0}', space=sflag, size = 0x4, scoped, tag = 'scoped memory for tpu_custom_call.1']
    #allocation5 [shape = 'u8[98304]{0}', space=vmem, size = 0x18000, scoped, tag = 'input window, operand 1, single buffered']
    #allocation6 [shape = 's32[1]{0}', space=sflag, size = 0x4, scoped, tag = 'scoped memory for tpu_custom_call.1']
    #allocation7 [shape = 'u8[2048]{0}', space=vmem, size = 0x800, scoped, tag = 'output window, operand 0, single buffered']
    %8 = vsyncpa [#allocation3], 0
    %9 = vsyncpa [#allocation6], 0
    %10 = vsyncpa [#allocation4], 0
    // Predicated region
    $region2: #{tpu_custom_call.1} parent=1 // pred_check
      _
    $region3: #{tpu_custom_call.1} parent=1 // pred_check_branch
      %12 = sbr.rel (0) target = $region5
    $region4: #{tpu_custom_call.1} parent=1 // pred_region
      %14 = vsyncadd [#allocation3], 0
      %s16 = sshll.u32 %s0, 4
      %s17 = int_to_ptr.hbm [resolvable:$true] %s16
      %s18 = sshll.u32 [#allocation2], 4
      %s19 = int_to_ptr.vmem [resolvable:$true] %s18
      %21 = dma.hbm_to_vmem [thread:$0]  %s17, 192, %s19, [#allocation3]
    $region5: #{tpu_custom_call.1} parent=1 // pred_fallthru
      _
    // Predicated region
    $region6: #{tpu_custom_call.1} parent=1 // pred_check
      _
    $region7: #{tpu_custom_call.1} parent=1 // pred_check_branch
      %23 = sbr.rel (0) target = $region9
    $region8: #{tpu_custom_call.1} parent=1 // pred_region
      %25 = vsyncadd [#allocation6], 0
      %s26 = sshll.u32 %s1, 4
      %s27 = int_to_ptr.hbm [resolvable:$true] %s26
      %s28 = sshll.u32 [#allocation5], 4
      %s29 = int_to_ptr.vmem [resolvable:$true] %s28
      %34 = dma.hbm_to_vmem [thread:$0]  %s27, 3072, %s29, [#allocation6], 64, 64, 4
    $region9: #{tpu_custom_call.1} parent=1 // pred_fallthru
      _
    // Predicated region
    $region10: #{tpu_custom_call.1} parent=1 // pred_check
      _
    $region11: #{tpu_custom_call.1} parent=1 // pred_check_branch
      %36 = sbr.rel (0) target = $region13
    $region12: #{tpu_custom_call.1} parent=1 // pred_region
      _
    $region13: #{tpu_custom_call.1} parent=1 // pred_fallthru
      _
    // Predicated region
    $region14: #{tpu_custom_call.1} parent=1 // pred_check
      _
    $region15: #{tpu_custom_call.1} parent=1 // pred_check_branch
      %38 = sbr.rel (0) target = $region17
    $region16: #{tpu_custom_call.1} parent=1 // pred_region
      %40 = dma.done [#allocation3], 192
    $region17: #{tpu_custom_call.1} parent=1 // pred_fallthru
      _
    // Predicated region
    $region18: #{tpu_custom_call.1} parent=1 // pred_check
      _
    $region19: #{tpu_custom_call.1} parent=1 // pred_check_branch
      %42 = sbr.rel (0) target = $region21
    $region20: #{tpu_custom_call.1} parent=1 // pred_region
      %44 = dma.done [#allocation6], 3072
    $region21: #{tpu_custom_call.1} parent=1 // pred_fallthru
      _
    %v45 = vld [vmem:[#allocation2] sm:$0x77]
    %v46 = vld [vmem:[#allocation2 + $0x8] sm:$0x7]
    %v47 = vld [vmem:[#allocation5] sm:$0xf]
    %v48 = vld [vmem:[#allocation5 + $0x4] sm:$0xf]
    %v49 = vld [vmem:[#allocation5 + $0x8] sm:$0xf]
    %v50 = vld [vmem:[#allocation5 + $0xc] sm:$0xf]
    %v51 = vld [vmem:[#allocation5 + $0x10] sm:$0xf]
    %v52 = vld [vmem:[#allocation5 + $0x14] sm:$0xf]
    %v53 = vld [vmem:[#allocation5 + $0x18] sm:$0xf]
    %v54 = vld [vmem:[#allocation5 + $0x1c] sm:$0xf]
    %v55 = vld [vmem:[#allocation5 + $0x20] sm:$0xf]
    %v56 = vld [vmem:[#allocation5 + $0x24] sm:$0xf]
    %v57 = vld [vmem:[#allocation5 + $0x28] sm:$0xf]
    %v58 = vld [vmem:[#allocation5 + $0x2c] sm:$0xf]
    %v59 = vld [vmem:[#allocation5 + $0x30] sm:$0xf]
    %v60 = vld [vmem:[#allocation5 + $0x34] sm:$0xf]
    %v61 = vld [vmem:[#allocation5 + $0x38] sm:$0xf]
    %v62 = vld [vmem:[#allocation5 + $0x3c] sm:$0xf]
    %v63 = vld [vmem:[#allocation5 + $0x40] sm:$0xf]
    %v64 = vld [vmem:[#allocation5 + $0x44] sm:$0xf]
    %v65 = vld [vmem:[#allocation5 + $0x48] sm:$0xf]
    %v66 = vld [vmem:[#allocation5 + $0x4c] sm:$0xf]
    %v67 = vld [vmem:[#allocation5 + $0x50] sm:$0xf]
    %v68 = vld [vmem:[#allocation5 + $0x54] sm:$0xf]
    %v69 = vld [vmem:[#allocation5 + $0x58] sm:$0xf]
    %v70 = vld [vmem:[#allocation5 + $0x5c] sm:$0xf]
    %v71 = vld [vmem:[#allocation5 + $0x60] sm:$0xf]
    %v72 = vld [vmem:[#allocation5 + $0x64] sm:$0xf]
    %v73 = vld [vmem:[#allocation5 + $0x68] sm:$0xf]
    %v74 = vld [vmem:[#allocation5 + $0x6c] sm:$0xf]
    %v75 = vld [vmem:[#allocation5 + $0x70] sm:$0xf]
    %v76 = vld [vmem:[#allocation5 + $0x74] sm:$0xf]
    %v77 = vld [vmem:[#allocation5 + $0x78] sm:$0xf]
    %v78 = vld [vmem:[#allocation5 + $0x7c] sm:$0xf]
    %v79 = vld [vmem:[#allocation5 + $0x80] sm:$0xf]
    %v80 = vld [vmem:[#allocation5 + $0x84] sm:$0xf]
    %v81 = vld [vmem:[#allocation5 + $0x88] sm:$0xf]
    %v82 = vld [vmem:[#allocation5 + $0x8c] sm:$0xf]
    %v83 = vld [vmem:[#allocation5 + $0x90] sm:$0xf]
    %v84 = vld [vmem:[#allocation5 + $0x94] sm:$0xf]
    %v85 = vld [vmem:[#allocation5 + $0x98] sm:$0xf]
    %v86 = vld [vmem:[#allocation5 + $0x9c] sm:$0xf]
    %v87 = vld [vmem:[#allocation5 + $0xa0] sm:$0xf]
    %v88 = vld [vmem:[#allocation5 + $0xa4] sm:$0xf]
    %v89 = vld [vmem:[#allocation5 + $0xa8] sm:$0xf]
    %v90 = vld [vmem:[#allocation5 + $0xac] sm:$0xf]
    %v91 = vld [vmem:[#allocation5 + $0xb0] sm:$0xf]
    %v92 = vld [vmem:[#allocation5 + $0xb4] sm:$0xf]
    %v93 = vld [vmem:[#allocation5 + $0xb8] sm:$0xf]
    %v94 = vld [vmem:[#allocation5 + $0xbc] sm:$0xf]
    %v95 = vld [vmem:[%s2] sm:$0x1]
    %v97 = vperm.slane %v95, 0
    %v101 = vunpack.c.l.b16 %v45
    %v102 = vunpack.c.h.b16 %v45
    %v103 = vunpack.c.l.b16 %v46
    %v104 = vpack.c.b16 %v101, %v101
    %v105 = vpack.c.b16 %v102, %v102
    %v106 = vpack.c.b16 %v103, %v103
    %v158 = vunpack.c.l.b16 %v47
    %v159 = vunpack.c.l.b16 %v48
    %v160 = vunpack.c.l.b16 %v49
    %v161 = vunpack.c.l.b16 %v50
    %v162 = vunpack.c.l.b16 %v51
    %v163 = vunpack.c.l.b16 %v52
    %v164 = vunpack.c.l.b16 %v53
    %v165 = vunpack.c.l.b16 %v54
    %v166 = vunpack.c.l.b16 %v55
    %v167 = vunpack.c.l.b16 %v56
    %v168 = vunpack.c.l.b16 %v57
    %v169 = vunpack.c.l.b16 %v58
    %v170 = vunpack.c.l.b16 %v59
    %v171 = vunpack.c.l.b16 %v60
    %v172 = vunpack.c.l.b16 %v61
    %v173 = vunpack.c.l.b16 %v62
    %v174 = vunpack.c.l.b16 %v63
    %v175 = vunpack.c.l.b16 %v64
    %v176 = vunpack.c.l.b16 %v65
    %v177 = vunpack.c.l.b16 %v66
    %v178 = vunpack.c.l.b16 %v67
    %v179 = vunpack.c.l.b16 %v68
    %v180 = vunpack.c.l.b16 %v69
    %v181 = vunpack.c.l.b16 %v70
    %v182 = vunpack.c.l.b16 %v71
    %v183 = vunpack.c.l.b16 %v72
    %v184 = vunpack.c.l.b16 %v73
    %v185 = vunpack.c.l.b16 %v74
    %v186 = vunpack.c.l.b16 %v75
    %v187 = vunpack.c.l.b16 %v76
    %v188 = vunpack.c.l.b16 %v77
    %v189 = vunpack.c.l.b16 %v78
    %v190 = vunpack.c.l.b16 %v79
    %v191 = vunpack.c.l.b16 %v80
    %v192 = vunpack.c.l.b16 %v81
    %v193 = vunpack.c.l.b16 %v82
    %v194 = vunpack.c.l.b16 %v83
    %v195 = vunpack.c.l.b16 %v84
    %v196 = vunpack.c.l.b16 %v85
    %v197 = vunpack.c.l.b16 %v86
    %v198 = vunpack.c.l.b16 %v87
    %v199 = vunpack.c.l.b16 %v88
    %v200 = vunpack.c.l.b16 %v89
    %v201 = vunpack.c.l.b16 %v90
    %v202 = vunpack.c.l.b16 %v91
    %v203 = vunpack.c.l.b16 %v92
    %v204 = vunpack.c.l.b16 %v93
    %v205 = vunpack.c.l.b16 %v94
    %v206 = vpack.c.b16 %v159, %v158
    %v207 = vpack.c.b16 %v161, %v160
    %v208 = vpack.c.b16 %v163, %v162
    %v209 = vpack.c.b16 %v165, %v164
    %v210 = vpack.c.b16 %v167, %v166
    %v211 = vpack.c.b16 %v169, %v168
    %v212 = vpack.c.b16 %v171, %v170
    %v213 = vpack.c.b16 %v173, %v172
    %v214 = vpack.c.b16 %v175, %v174
    %v215 = vpack.c.b16 %v177, %v176
    %v216 = vpack.c.b16 %v179, %v178
    %v217 = vpack.c.b16 %v181, %v180
    %v218 = vpack.c.b16 %v183, %v182
    %v219 = vpack.c.b16 %v185, %v184
    %v220 = vpack.c.b16 %v187, %v186
    %v221 = vpack.c.b16 %v189, %v188
    %v222 = vpack.c.b16 %v191, %v190
    %v223 = vpack.c.b16 %v193, %v192
    %v224 = vpack.c.b16 %v195, %v194
    %v225 = vpack.c.b16 %v197, %v196
    %v226 = vpack.c.b16 %v199, %v198
    %v227 = vpack.c.b16 %v201, %v200
    %v228 = vpack.c.b16 %v203, %v202
    %v229 = vpack.c.b16 %v205, %v204
    %254 = vmatpush.bf16.msra.mxu0 %v213
    %255 = vmatpush.bf16.msra.mxu0 %v212
    %256 = vmatpush.bf16.msra.mxu0 %v211
    %257 = vmatpush.bf16.msra.mxu0 %v210
    %258 = vmatpush.bf16.msra.mxu0 %v209
    %259 = vmatpush.bf16.msra.mxu0 %v208
    %260 = vmatpush.bf16.msra.mxu0 %v207
    %261 = vmatpush.bf16.msra.mxu0 %v206
    %262 = vmatmul.bf16.gmra.mxu0 %v104
    %v263 = vpop.f32.mrf.mxu0
    %v264 = vadd.f32 %v97, %v263
    %v265 = vpop.f32.mrf.mxu0
    %266 = vdwg.mxu0
    %267 = vmatpush.bf16.msra.mxu0 %v221
    %268 = vmatpush.bf16.msra.mxu0 %v220
    %269 = vmatpush.bf16.msra.mxu0 %v219
    %270 = vmatpush.bf16.msra.mxu0 %v218
    %271 = vmatpush.bf16.msra.mxu0 %v217
    %272 = vmatpush.bf16.msra.mxu0 %v216
    %273 = vmatpush.bf16.msra.mxu0 %v215
    %274 = vmatpush.bf16.msra.mxu0 %v214
    %275 = vmatmul.bf16.gmra.mxu0 %v105
    %v276 = vpop.f32.mrf.mxu0
    %v277 = vadd.f32 %v264, %v276
    %v278 = vpop.f32.mrf.mxu0
    %279 = vdwg.mxu0
    %280 = vmatpush.bf16.msra.mxu0 %v229
    %281 = vmatpush.bf16.msra.mxu0 %v228
    %282 = vmatpush.bf16.msra.mxu0 %v227
    %283 = vmatpush.bf16.msra.mxu0 %v226
    %284 = vmatpush.bf16.msra.mxu0 %v225
    %285 = vmatpush.bf16.msra.mxu0 %v224
    %286 = vmatpush.bf16.msra.mxu0 %v223
    %287 = vmatpush.bf16.msra.mxu0 %v222
    %288 = vmatmul.bf16.gmra.mxu0 %v106
    %v289 = vpop.f32.mrf.mxu0
    %v290 = vadd.f32 %v277, %v289
    %v291 = vpop.f32.mrf.mxu0
    %292 = vdwg.mxu0
    %v293 = vmax.f32 %v290, 0.0
    %v294 = vpack.c.bf16 %v293, %v293
    %295 = vst [vmem:[#allocation7] sm:$0x7] %v294
    // Predicated region
    $region22: #{tpu_custom_call.1} parent=1 // pred_check
      _
    $region23: #{tpu_custom_call.1} parent=1 // pred_check_branch
      %297 = sbr.rel (0) target = $region25
    $region24: #{tpu_custom_call.1} parent=1 // pred_region
      %299 = vsyncadd [#allocation4], 0
      %s301 = sshll.u32 [#allocation7], 4
      %s302 = int_to_ptr.vmem [resolvable:$true] %s301
      %s303 = sshll.u32 %s3, 4
      %s304 = int_to_ptr.hbm [resolvable:$true] %s303
      %306 = dma.vmem_to_hbm [thread:$0]  %s302, 64, %s304, [#allocation4]
    $region25: #{tpu_custom_call.1} parent=1 // pred_fallthru
      _
    // Predicated region
    $region26: #{tpu_custom_call.1} parent=1 // pred_check
      _
    $region27: #{tpu_custom_call.1} parent=1 // pred_check_branch
      %308 = sbr.rel (0) target = $region29
    $region28: #{tpu_custom_call.1} parent=1 // pred_region
      %310 = dma.done [#allocation4], 64
    $region29: #{tpu_custom_call.1} parent=1 // pred_fallthru
      _
    %311 = vsyncpa [#allocation3], 1
    %312 = vsyncpa [#allocation6], 1
    %313 = vsyncpa [#allocation4], 1

// kernel: tpu_custom_call.1
$region0: #{tpu_custom_call.1}
  #allocation0 [shape = 'u32[]', space=smem, size = 0x4, offset = 0x4, fixed_abs, tag = 'smem constant byte address 0x4 - core index']
  #allocation1 [shape = 'u32[72,128]{1,0:T(1,128)}', space=vmem, size = 0x9000, scoped, tag = 'internal scratch']
  %s0 = inlined_call_operand.hbm [shape: bf16[6,384], index: 0, kind: input, shape index: {}]
  %s1 = inlined_call_operand.hbm [shape: bf16[384,128], index: 1, kind: input, shape index: {}]
  %s2 = inlined_call_operand.vmem [shape: f32[1,128], index: 2, kind: input, shape index: {}]
  %s3 = inlined_call_operand.hbm [shape: bf16[6,128], index: 3, kind: output, shape index: {}]
  %s4 = sld [smem:[#allocation0]]
  $region30: #{tpu_custom_call.1} parent=0
    _
  %s6 = ssub.s32 1, %s4
  %s7 = scalar_select 0, %s6, %s4
  $region1: #{tpu_custom_call.1} parent=0
    #allocation2 [shape = 'u8[6144]{0}', space=vmem, size = 0x1800, scoped, tag = 'input window, operand 0, single buffered']
    #allocation3 [shape = 's32[1]{0}', space=sflag, size = 0x4, scoped, tag = 'scoped memory for tpu_custom_call.1']
    #allocation4 [shape = 's32[1]{0}', space=sflag, size = 0x4, scoped, tag = 'scoped memory for tpu_custom_call.1']
    #allocation5 [shape = 'u8[98304]{0}', space=vmem, size = 0x18000, scoped, tag = 'input window, operand 1, single buffered']
    #allocation6 [shape = 's32[1]{0}', space=sflag, size = 0x4, scoped, tag = 'scoped memory for tpu_custom_call.1']
    #allocation7 [shape = 'u8[2048]{0}', space=vmem, size = 0x800, scoped, tag = 'output window, operand 0, single buffered']
    %8 = vsyncpa [#allocation3], 0
    %9 = vsyncpa [#allocation6], 0
    %10 = vsyncpa [#allocation4], 0
    // Predicated region
    $region2: #{tpu_custom_call.1} parent=1 // pred_check
      _
    $region3: #{tpu_custom_call.1} parent=1 // pred_check_branch
      %12 = sbr.rel (0) target = $region5
    $region4: #{tpu_custom_call.1} parent=1 // pred_region
      %14 = vsyncadd [#allocation3], 0
      %s16 = sshll.u32 %s0, 4
      %s17 = int_to_ptr.hbm [resolvable:$true] %s16
      %s18 = sshll.u32 [#allocation2], 4
      %s19 = int_to_ptr.vmem [resolvable:$true] %s18
      %21 = dma.hbm_to_vmem [thread:$0]  %s17, 192, %s19, [#allocation3]
    $region5: #{tpu_custom_call.1} parent=1 // pred_fallthru
      _
    // Predicated region
    $region6: #{tpu_custom_call.1} parent=1 // pred_check
      _
    $region7: #{tpu_custom_call.1} parent=1 // pred_check_branch
      %23 = sbr.rel (0) target = $region9
    $region8: #{tpu_custom_call.1} parent=1 // pred_region
      %25 = vsyncadd [#allocation6], 0
      %s26 = sshll.u32 %s1, 4
      %s27 = int_to_ptr.hbm [resolvable:$true] %s26
      %s28 = sshll.u32 [#allocation5], 4
      %s29 = int_to_ptr.vmem [resolvable:$true] %s28
      %34 = dma.hbm_to_vmem [thread:$0]  %s27, 3072, %s29, [#allocation6], 64, 64, 4
    $region9: #{tpu_custom_call.1} parent=1 // pred_fallthru
      _
    // Predicated region
    $region10: #{tpu_custom_call.1} parent=1 // pred_check
      _
    $region11: #{tpu_custom_call.1} parent=1 // pred_check_branch
      %36 = sbr.rel (0) target = $region13
    $region12: #{tpu_custom_call.1} parent=1 // pred_region
      _
    $region13: #{tpu_custom_call.1} parent=1 // pred_fallthru
      _
    // Predicated region
    $region14: #{tpu_custom_call.1} parent=1 // pred_check
      _
    $region15: #{tpu_custom_call.1} parent=1 // pred_check_branch
      %38 = sbr.rel (0) target = $region17
    $region16: #{tpu_custom_call.1} parent=1 // pred_region
      %40 = dma.done [#allocation3], 192
    $region17: #{tpu_custom_call.1} parent=1 // pred_fallthru
      _
    // Predicated region
    $region18: #{tpu_custom_call.1} parent=1 // pred_check
      _
    $region19: #{tpu_custom_call.1} parent=1 // pred_check_branch
      %42 = sbr.rel (0) target = $region21
    $region20: #{tpu_custom_call.1} parent=1 // pred_region
      %44 = dma.done [#allocation6], 3072
    $region21: #{tpu_custom_call.1} parent=1 // pred_fallthru
      _
    %v45 = vld [vmem:[#allocation2] sm:$0x77]
    %v46 = vld [vmem:[#allocation2 + $0x8] sm:$0x7]
    %v47 = vld [vmem:[#allocation5] sm:$0xf]
    %v48 = vld [vmem:[#allocation5 + $0x4] sm:$0xf]
    %v49 = vld [vmem:[#allocation5 + $0x8] sm:$0xf]
    %v50 = vld [vmem:[#allocation5 + $0xc] sm:$0xf]
    %v51 = vld [vmem:[#allocation5 + $0x10] sm:$0xf]
    %v52 = vld [vmem:[#allocation5 + $0x14] sm:$0xf]
    %v53 = vld [vmem:[#allocation5 + $0x18] sm:$0xf]
    %v54 = vld [vmem:[#allocation5 + $0x1c] sm:$0xf]
    %v55 = vld [vmem:[#allocation5 + $0x20] sm:$0xf]
    %v56 = vld [vmem:[#allocation5 + $0x24] sm:$0xf]
    %v57 = vld [vmem:[#allocation5 + $0x28] sm:$0xf]
    %v58 = vld [vmem:[#allocation5 + $0x2c] sm:$0xf]
    %v59 = vld [vmem:[#allocation5 + $0x30] sm:$0xf]
    %v60 = vld [vmem:[#allocation5 + $0x34] sm:$0xf]
    %v61 = vld [vmem:[#allocation5 + $0x38] sm:$0xf]
    %v62 = vld [vmem:[#allocation5 + $0x3c] sm:$0xf]
    %v63 = vld [vmem:[#allocation5 + $0x40] sm:$0xf]
    %v64 = vld [vmem:[#allocation5 + $0x44] sm:$0xf]
    %v65 = vld [vmem:[#allocation5 + $0x48] sm:$0xf]
    %v66 = vld [vmem:[#allocation5 + $0x4c] sm:$0xf]
    %v67 = vld [vmem:[#allocation5 + $0x50] sm:$0xf]
    %v68 = vld [vmem:[#allocation5 + $0x54] sm:$0xf]
    %v69 = vld [vmem:[#allocation5 + $0x58] sm:$0xf]
    %v70 = vld [vmem:[#allocation5 + $0x5c] sm:$0xf]
    %v71 = vld [vmem:[#allocation5 + $0x60] sm:$0xf]
    %v72 = vld [vmem:[#allocation5 + $0x64] sm:$0xf]
    %v73 = vld [vmem:[#allocation5 + $0x68] sm:$0xf]
    %v74 = vld [vmem:[#allocation5 + $0x6c] sm:$0xf]
    %v75 = vld [vmem:[#allocation5 + $0x70] sm:$0xf]
    %v76 = vld [vmem:[#allocation5 + $0x74] sm:$0xf]
    %v77 = vld [vmem:[#allocation5 + $0x78] sm:$0xf]
    %v78 = vld [vmem:[#allocation5 + $0x7c] sm:$0xf]
    %v79 = vld [vmem:[#allocation5 + $0x80] sm:$0xf]
    %v80 = vld [vmem:[#allocation5 + $0x84] sm:$0xf]
    %v81 = vld [vmem:[#allocation5 + $0x88] sm:$0xf]
    %v82 = vld [vmem:[#allocation5 + $0x8c] sm:$0xf]
    %v83 = vld [vmem:[#allocation5 + $0x90] sm:$0xf]
    %v84 = vld [vmem:[#allocation5 + $0x94] sm:$0xf]
    %v85 = vld [vmem:[#allocation5 + $0x98] sm:$0xf]
    %v86 = vld [vmem:[#allocation5 + $0x9c] sm:$0xf]
    %v87 = vld [vmem:[#allocation5 + $0xa0] sm:$0xf]
    %v88 = vld [vmem:[#allocation5 + $0xa4] sm:$0xf]
    %v89 = vld [vmem:[#allocation5 + $0xa8] sm:$0xf]
    %v90 = vld [vmem:[#allocation5 + $0xac] sm:$0xf]
    %v91 = vld [vmem:[#allocation5 + $0xb0] sm:$0xf]
    %v92 = vld [vmem:[#allocation5 + $0xb4] sm:$0xf]
    %v93 = vld [vmem:[#allocation5 + $0xb8] sm:$0xf]
    %v94 = vld [vmem:[#allocation5 + $0xbc] sm:$0xf]
    %v95 = vld [vmem:[%s2] sm:$0x1]
    %v97 = vperm.slane %v95, 0
    %v101 = vunpack.c.l.b16 %v45
    %v102 = vunpack.c.h.b16 %v45
    %v103 = vunpack.c.l.b16 %v46
    %v104 = vpack.c.b16 %v101, %v101
    %v105 = vpack.c.b16 %v102, %v102
    %v106 = vpack.c.b16 %v103, %v103
    %v158 = vunpack.c.l.b16 %v47
    %v159 = vunpack.c.l.b16 %v48
    %v160 = vunpack.c.l.b16 %v49
    %v161 = vunpack.c.l.b16 %v50
    %v162 = vunpack.c.l.b16 %v51
    %v163 = vunpack.c.l.b16 %v52
    %v164 = vunpack.c.l.b16 %v53
    %v165 = vunpack.c.l.b16 %v54
    %v166 = vunpack.c.l.b16 %v55
    %v167 = vunpack.c.l.b16 %v56
    %v168 = vunpack.c.l.b16 %v57
    %v169 = vunpack.c.l.b16 %v58
    %v170 = vunpack.c.l.b16 %v59
    %v171 = vunpack.c.l.b16 %v60
    %v172 = vunpack.c.l.b16 %v61
    %v173 = vunpack.c.l.b16 %v62
    %v174 = vunpack.c.l.b16 %v63
    %v175 = vunpack.c.l.b16 %v64
    %v176 = vunpack.c.l.b16 %v65
    %v177 = vunpack.c.l.b16 %v66
    %v178 = vunpack.c.l.b16 %v67
    %v179 = vunpack.c.l.b16 %v68
    %v180 = vunpack.c.l.b16 %v69
    %v181 = vunpack.c.l.b16 %v70
    %v182 = vunpack.c.l.b16 %v71
    %v183 = vunpack.c.l.b16 %v72
    %v184 = vunpack.c.l.b16 %v73
    %v185 = vunpack.c.l.b16 %v74
    %v186 = vunpack.c.l.b16 %v75
    %v187 = vunpack.c.l.b16 %v76
    %v188 = vunpack.c.l.b16 %v77
    %v189 = vunpack.c.l.b16 %v78
    %v190 = vunpack.c.l.b16 %v79
    %v191 = vunpack.c.l.b16 %v80
    %v192 = vunpack.c.l.b16 %v81
    %v193 = vunpack.c.l.b16 %v82
    %v194 = vunpack.c.l.b16 %v83
    %v195 = vunpack.c.l.b16 %v84
    %v196 = vunpack.c.l.b16 %v85
    %v197 = vunpack.c.l.b16 %v86
    %v198 = vunpack.c.l.b16 %v87
    %v199 = vunpack.c.l.b16 %v88
    %v200 = vunpack.c.l.b16 %v89
    %v201 = vunpack.c.l.b16 %v90
    %v202 = vunpack.c.l.b16 %v91
    %v203 = vunpack.c.l.b16 %v92
    %v204 = vunpack.c.l.b16 %v93
    %v205 = vunpack.c.l.b16 %v94
    %v206 = vpack.c.b16 %v159, %v158
    %v207 = vpack.c.b16 %v161, %v160
    %v208 = vpack.c.b16 %v163, %v162
    %v209 = vpack.c.b16 %v165, %v164
    %v210 = vpack.c.b16 %v167, %v166
    %v211 = vpack.c.b16 %v169, %v168
    %v212 = vpack.c.b16 %v171, %v170
    %v213 = vpack.c.b16 %v173, %v172
    %v214 = vpack.c.b16 %v175, %v174
    %v215 = vpack.c.b16 %v177, %v176
    %v216 = vpack.c.b16 %v179, %v178
    %v217 = vpack.c.b16 %v181, %v180
    %v218 = vpack.c.b16 %v183, %v182
    %v219 = vpack.c.b16 %v185, %v184
    %v220 = vpack.c.b16 %v187, %v186
    %v221 = vpack.c.b16 %v189, %v188
    %v222 = vpack.c.b16 %v191, %v190
    %v223 = vpack.c.b16 %v193, %v192
    %v224 = vpack.c.b16 %v195, %v194
    %v225 = vpack.c.b16 %v197, %v196
    %v226 = vpack.c.b16 %v199, %v198
    %v227 = vpack.c.b16 %v201, %v200
    %v228 = vpack.c.b16 %v203, %v202
    %v229 = vpack.c.b16 %v205, %v204
    %254 = vmatpush.bf16.msra.mxu0 %v213
    %255 = vmatpush.bf16.msra.mxu0 %v212
    %256 = vmatpush.bf16.msra.mxu0 %v211
    %257 = vmatpush.bf16.msra.mxu0 %v210
    %258 = vmatpush.bf16.msra.mxu0 %v209
    %259 = vmatpush.bf16.msra.mxu0 %v208
    %260 = vmatpush.bf16.msra.mxu0 %v207
    %261 = vmatpush.bf16.msra.mxu0 %v206
    %262 = vmatmul.bf16.gmra.mxu0 %v104
    %v263 = vpop.f32.mrf.mxu0
    %v264 = vadd.f32 %v97, %v263
    %v265 = vpop.f32.mrf.mxu0
    %266 = vdwg.mxu0
    %267 = vmatpush.bf16.msra.mxu0 %v221
    %268 = vmatpush.bf16.msra.mxu0 %v220
    %269 = vmatpush.bf16.msra.mxu0 %v219
    %270 = vmatpush.bf16.msra.mxu0 %v218
    %271 = vmatpush.bf16.msra.mxu0 %v217
    %272 = vmatpush.bf16.msra.mxu0 %v216
    %273 = vmatpush.bf16.msra.mxu0 %v215
    %274 = vmatpush.bf16.msra.mxu0 %v214
    %275 = vmatmul.bf16.gmra.mxu0 %v105
    %v276 = vpop.f32.mrf.mxu0
    %v277 = vadd.f32 %v264, %v276
    %v278 = vpop.f32.mrf.mxu0
    %279 = vdwg.mxu0
    %280 = vmatpush.bf16.msra.mxu0 %v229
    %281 = vmatpush.bf16.msra.mxu0 %v228
    %282 = vmatpush.bf16.msra.mxu0 %v227
    %283 = vmatpush.bf16.msra.mxu0 %v226
    %284 = vmatpush.bf16.msra.mxu0 %v225
    %285 = vmatpush.bf16.msra.mxu0 %v224
    %286 = vmatpush.bf16.msra.mxu0 %v223
    %287 = vmatpush.bf16.msra.mxu0 %v222
    %288 = vmatmul.bf16.gmra.mxu0 %v106
    %v289 = vpop.f32.mrf.mxu0
    %v290 = vadd.f32 %v277, %v289
    %v291 = vpop.f32.mrf.mxu0
    %292 = vdwg.mxu0
    %v293 = vmax.f32 %v290, 0.0
    %v294 = vpack.c.bf16 %v293, %v293
    %295 = vst [vmem:[#allocation7] sm:$0x7] %v294
    // Predicated region
    $region22: #{tpu_custom_call.1} parent=1 // pred_check
      _
    $region23: #{tpu_custom_call.1} parent=1 // pred_check_branch
      %297 = sbr.rel (0) target = $region25
    $region24: #{tpu_custom_call.1} parent=1 // pred_region
      %299 = vsyncadd [#allocation4], 0
      %s301 = sshll.u32 [#allocation7], 4
      %s302 = int_to_ptr.vmem [resolvable:$true] %s301
      %s303 = sshll.u32 %s3, 4
      %s304 = int_to_ptr.hbm [resolvable:$true] %s303
      %306 = dma.vmem_to_hbm [thread:$0]  %s302, 64, %s304, [#allocation4]
    $region25: #{tpu_custom_call.1} parent=1 // pred_fallthru
      _
    // Predicated region
    $region26: #{tpu_custom_call.1} parent=1 // pred_check
      _
    $region27: #{tpu_custom_call.1} parent=1 // pred_check_branch
      %308 = sbr.rel (0) target = $region29
    $region28: #{tpu_custom_call.1} parent=1 // pred_region
      %310 = dma.done [#allocation4], 64
    $region29: #{tpu_custom_call.1} parent=1 // pred_fallthru
      _
    %311 = vsyncpa [#allocation3], 1
    %312 = vsyncpa [#allocation6], 1
    %313 = vsyncpa [#allocation4], 1

</llo_original>
